<compile_context>
chip_gen: v5e
topology: v5e:2x2
jax: 0.10.0
libtpu: 0.0.40
codegen_flags: <defaults>
</compile_context>

<pallas_src>
import functools

import numpy as np

import jax
import jax.numpy as jnp
from jax import lax
from jax.experimental import pallas as pl
from jax.experimental.pallas import tpu as pltpu


def _elu_feature_map(x):
    # elu(x) + 1  ==  x + 1 for x > 0, exp(x) for x <= 0
    return jnp.where(x > 0, x + 1.0, jnp.exp(x))


def _layernorm(x, gamma, beta, eps=1e-5):
    mean = jnp.mean(x, axis=-1, keepdims=True)
    var = jnp.mean((x - mean) ** 2, axis=-1, keepdims=True)
    return (x - mean) * lax.rsqrt(var + eps) * gamma + beta


# ---------------------------------------------------------------------------
# Phase 1: accumulate KV = Kf^T @ V  [C,C]  and  Ksum = sum_s Kf  [1,C]  (f32)
# ---------------------------------------------------------------------------
def _kv_summary_kernel(src_ref, wkv_ref, kv_ref, ksum_ref, kv_acc, ksum_acc):
    s_idx = pl.program_id(1)

    @pl.when(s_idx == 0)
    def _init():
        kv_acc[...] = jnp.zeros_like(kv_acc)
        ksum_acc[...] = jnp.zeros_like(ksum_acc)

    src = src_ref[0]                                   # [TS, C] compute dtype
    mm_dtype = src.dtype
    c = kv_acc.shape[-1]

    # Fused K|V projection: a single MXU RHS push / dispatch per S tile.
    kvp = jnp.dot(src, wkv_ref[...], preferred_element_type=jnp.float32)  # [TS, 2C]
    k = kvp[:, :c]
    v = kvp[:, c:]
    kf = _elu_feature_map(k)                           # f32

    # KV += Kf^T @ V without materializing a transpose (contract axis 0 vs axis 0).
    # TODO(synk): verify with pl.lower_as_mlir that Mosaic takes the native
    # transposed-LHS path here (no explicit [TS, C] transpose per S tile).
    kv_acc[...] += lax.dot_general(
        kf.astype(mm_dtype), v.astype(mm_dtype),
        dimension_numbers=(((0,), (0,)), ((), ())),
        preferred_element_type=jnp.float32)
    ksum_acc[...] += jnp.sum(kf, axis=0, keepdims=True)                 # [1, C]

    @pl.when(s_idx == pl.num_programs(1) - 1)
    def _finalize():
        # Keep the tiny summary in f32; it is cast to the compute dtype only at
        # the phase-2 matmul (bf16 storage of the O(S)-magnitude sums would keep
        # only ~3 significant digits).
        kv_ref[0] = kv_acc[...]
        ksum_ref[0] = ksum_acc[...]


# ---------------------------------------------------------------------------
# Phase 2: per-L-tile query side, fused msg|den matmul, merge, LN1, MLP, LN2
# ---------------------------------------------------------------------------
def _encoder_out_kernel(x_ref, kvden_ref, wq_ref, wm_ref, w1x_ref, w1m_ref, w2_ref,
                        g1_ref, b1_ref, g2_ref, b2_ref, out_ref, *, approx_recip):
    x = x_ref[0]                                       # [TL, C]
    mm_dtype = x.dtype
    c = x.shape[-1]

    # q projection + elu feature map (elementwise in f32)
    q = jnp.dot(x, wq_ref[...], preferred_element_type=jnp.float32)      # [TL, C]
    qf = _elu_feature_map(q)

    # ONE matmul against the fused per-batch RHS [KV_blockdiag | blockdiag*Ksum]:
    #   cols 0:C  -> message numerator     qf @ KV
    #   cols C:2C -> per-head normalizer   qf @ den_mat
    rhs = kvden_ref[0].astype(mm_dtype)                # [C, 2C]
    md = jnp.dot(qf.astype(mm_dtype), rhs, preferred_element_type=jnp.float32)
    msg = md[:, :c]
    den = md[:, c:]
    msg = msg * pl.reciprocal(den + 1e-6, approx=approx_recip)

    # merge projection + LayerNorm1
    msg = jnp.dot(msg.astype(mm_dtype), wm_ref[...],
                  preferred_element_type=jnp.float32)
    msg = _layernorm(msg, g1_ref[0], b1_ref[0])

    # MLP on cat([x, message]) with no lane concat: w1 pre-split into x / msg halves.
    hid = (jnp.dot(x, w1x_ref[...], preferred_element_type=jnp.float32)
           + jnp.dot(msg.astype(mm_dtype), w1m_ref[...],
                     preferred_element_type=jnp.float32))                # [TL, 2C]
    hid = jnp.maximum(hid, 0.0)
    out = jnp.dot(hid.astype(mm_dtype), w2_ref[...],
                  preferred_element_type=jnp.float32)                    # [TL, C]
    out = _layernorm(out, g2_ref[0], b2_ref[0])

    out_ref[0] = out.astype(out_ref.dtype)


# ---------------------------------------------------------------------------
# Wrapper
# ---------------------------------------------------------------------------
def _round_up(x, m):
    return ((x + m - 1) // m) * m


def _pad_dim(a, axis, new_size):
    pad = new_size - a.shape[axis]
    if pad == 0:
        return a
    widths = [(0, 0)] * a.ndim
    widths[axis] = (0, pad)
    return jnp.pad(a, widths)


def _const_spec(shape, single_buffer=True):
    nd = len(shape)
    index_map = lambda n, t: (0,) * nd
    if single_buffer:
        # Constant index_map -> never re-fetched: single-buffer to halve resident VMEM.
        return pl.BlockSpec(shape, index_map,
                            pipeline_mode=pl.Buffered(buffer_count=1))
    return pl.BlockSpec(shape, index_map)


def loftr_encoder_layer(x, source, params, nhead, *,
                        compute_dtype=jnp.bfloat16,
                        out_dtype=None,
                        l_tile=512, s_tile=1024,
                        vmem_limit_bytes=48 * 1024 * 1024,
                        single_buffer_weights=True,
                        approx_reciprocal=False):
    N, L, C = x.shape
    _, S, _ = source.shape
    assert C % nhead == 0
    head_dim = C // nhead
    out_dtype = jnp.dtype(out_dtype) if out_dtype is not None else x.dtype
    cdt = jnp.dtype(compute_dtype) if compute_dtype is not None else jnp.dtype(x.dtype)

    # Row (sublane) granularity: bf16 packs 2 rows per sublane -> multiples of 16.
    row_align = 16 if cdt == jnp.dtype(jnp.bfloat16) else 8

    TL = _round_up(max(8, min(l_tile, _round_up(L, row_align))), row_align)
    TS = _round_up(max(8, min(s_tile, _round_up(S, row_align))), row_align)
    Lp = _round_up(L, TL)
    Sp = _round_up(S, TS)
    n_l = Lp // TL
    n_s = Sp // TS

    xc = _pad_dim(x.astype(cdt), 1, Lp)
    srcc = _pad_dim(source.astype(cdt), 1, Sp)

    wq = params["wq"].astype(cdt)
    wkv = jnp.concatenate([params["wk"], params["wv"]], axis=1).astype(cdt)  # [C, 2C]
    wm = params["wm"].astype(cdt)
    # Split MLP layer 1 so the kernel never concatenates along the lane dim.
    w1x = params["w1"][:C].astype(cdt)
    w1m = params["w1"][C:].astype(cdt)
    w2 = params["w2"].astype(cdt)
    g1 = params["g1"].astype(jnp.float32)
    b1 = params["b1"].astype(jnp.float32)
    g2 = params["g2"].astype(jnp.float32)
    b2 = params["b2"].astype(jnp.float32)

    # ---- Phase 1: linear-attention summary (S reduction, f32 accumulators) ----
    kv, ksum = pl.pallas_call(
        _kv_summary_kernel,
        grid=(N, n_s),
        in_specs=[
            pl.BlockSpec((1, TS, C), lambda n, s: (n, s, 0)),            # source tile
            _const_spec((C, 2 * C), single_buffer_weights),              # [Wk | Wv]
        ],
        out_specs=[
            pl.BlockSpec((1, C, C), lambda n, s: (n, 0, 0)),             # KV
            pl.BlockSpec((1, 1, C), lambda n, s: (n, 0, 0)),             # Ksum
        ],
        out_shape=[
            jax.ShapeDtypeStruct((N, C, C), jnp.float32),
            jax.ShapeDtypeStruct((N, 1, C), jnp.float32),
        ],
        scratch_shapes=[
            pltpu.VMEM((C, C), jnp.float32),
            pltpu.VMEM((1, C), jnp.float32),
        ],
        compiler_params=pltpu.CompilerParams(
            dimension_semantics=("parallel", "arbitrary"),
            vmem_limit_bytes=vmem_limit_bytes),
    )(srcc, wkv)

    # ---- Tiny per-batch fixups + fused RHS assembly (O(N*C*C), plain XLA) ----
    head_of = np.arange(C) // head_dim
    blockdiag = jnp.asarray((head_of[:, None] == head_of[None, :]).astype(np.float32))
    # Zero-padded source rows contribute 0 to KV (v rows are 0) and exactly +1 per
    # channel to Ksum (elu_fm(0)=1): subtract the pad count instead of masking tiles.
    ksum_c = ksum[:, 0, :] - float(Sp - S)                               # [N, C]
    kv_bd = kv * blockdiag                                               # [N, C, C]
    den_mat = blockdiag * ksum_c[:, :, None]                             # [N, C, C]
    kvden = jnp.concatenate([kv_bd, den_mat], axis=-1)                   # [N, C, 2C] f32

    # ---- Phase 2: per-L-tile output (fully parallel, megacore-friendly grid) ----
    out_kernel = functools.partial(_encoder_out_kernel,
                                   approx_recip=approx_reciprocal)

    out = pl.pallas_call(
        out_kernel,
        grid=(N, n_l),
        in_specs=[
            pl.BlockSpec((1, TL, C), lambda n, l: (n, l, 0)),            # x tile
            pl.BlockSpec((1, C, 2 * C), lambda n, l: (n, 0, 0)),         # fused KV|den
            _const_spec((C, C), single_buffer_weights),                  # Wq
            _const_spec((C, C), single_buffer_weights),                  # Wmerge
            _const_spec((C, 2 * C), single_buffer_weights),              # W1 (x half)
            _const_spec((C, 2 * C), single_buffer_weights),              # W1 (msg half)
            _const_spec((2 * C, C), single_buffer_weights),              # W2
            _const_spec((1, C), single_buffer_weights),                  # norm1 gamma
            _const_spec((1, C), single_buffer_weights),                  # norm1 beta
            _const_spec((1, C), single_buffer_weights),                  # norm2 gamma
            _const_spec((1, C), single_buffer_weights),                  # norm2 beta
        ],
        out_specs=pl.BlockSpec((1, TL, C), lambda n, l: (n, l, 0)),
        out_shape=jax.ShapeDtypeStruct((N, Lp, C), out_dtype),
        compiler_params=pltpu.CompilerParams(
            dimension_semantics=("parallel", "parallel"),
            vmem_limit_bytes=vmem_limit_bytes),
    )(xc, kvden, wq, wm, w1x, w1m, w2, g1, b1, g2, b2)

    return out[:, :L, :]


# ---------------------------------------------------------------------------
# Pure-JAX reference mirroring the PyTorch forward (for verification)
# ---------------------------------------------------------------------------
def loftr_encoder_layer_ref(x, source, params, nhead):
    N, L, C = x.shape
    S = source.shape[1]
    D = C // nhead
    q = (x @ params["wq"]).reshape(N, L, nhead, D)
    k = (source @ params["wk"]).reshape(N, S, nhead, D)
    v = (source @ params["wv"]).reshape(N, S, nhead, D)

    Q = jnp.where(q > 0, q + 1.0, jnp.exp(q))
    K = jnp.where(k > 0, k + 1.0, jnp.exp(k))
    V = v / S
    KV = jnp.einsum("nshd,nshv->nhdv", K, V)
    Z = 1.0 / (jnp.einsum("nlhd,nhd->nlh", Q, K.sum(axis=1)) + 1e-6)
    msg = jnp.einsum("nlhd,nhdv,nlh->nlhv", Q, KV, Z) * S
    msg = msg.reshape(N, L, C) @ params["wm"]

    def ln(t, g, b):
        m = t.mean(-1, keepdims=True)
        var = ((t - m) ** 2).mean(-1, keepdims=True)
        return (t - m) * lax.rsqrt(var + 1e-5) * g + b

    msg = ln(msg, params["g1"][0], params["b1"][0])
    h = jnp.concatenate([x, msg], axis=-1)
    h = jnp.maximum(h @ params["w1"], 0.0) @ params["w2"]
    return ln(h, params["g2"][0], params["b2"][0])


if __name__ == "__main__":
    # NOTE: d_model=32 is a lane-sparse smoke-test shape; benchmark / tune on the
    # real LoFTR d_model (128 / 256) where every tensor is lane-dense.
    N, d_model, nhead = 2, 32, 4

    key = jax.random.PRNGKey(0)
    ks = jax.random.split(key, 12)
    scale = 0.1
    params = {
        "wq": scale * jax.random.normal(ks[2], (d_model, d_model), jnp.float32),
        "wk": scale * jax.random.normal(ks[3], (d_model, d_model), jnp.float32),
        "wv": scale * jax.random.normal(ks[4], (d_model, d_model), jnp.float32),
        "wm": scale * jax.random.normal(ks[5], (d_model, d_model), jnp.float32),
        "w1": scale * jax.random.normal(ks[6], (2 * d_model, 2 * d_model), jnp.float32),
        "w2": scale * jax.random.normal(ks[7], (2 * d_model, d_model), jnp.float32),
        "g1": 1.0 + 0.05 * jax.random.normal(ks[8], (1, d_model), jnp.float32),
        "b1": 0.02 * jax.random.normal(ks[9], (1, d_model), jnp.float32),
        "g2": 1.0 + 0.05 * jax.random.normal(ks[10], (1, d_model), jnp.float32),
        "b2": 0.02 * jax.random.normal(ks[11], (1, d_model), jnp.float32),
    }

    # Case 1: small single-tile shapes, f32 compute (tight tolerance)
    L1, S1 = 8, 8
    x1 = jax.random.normal(ks[0], (N, L1, d_model), jnp.float32)
    s1 = jax.random.normal(ks[1], (N, S1, d_model), jnp.float32)
    out1 = jax.block_until_ready(
        loftr_encoder_layer(x1, s1, params, nhead, compute_dtype=jnp.float32))
    ref1 = loftr_encoder_layer_ref(x1, s1, params, nhead)
    assert out1.shape == (N, L1, d_model)
    assert jnp.allclose(out1, ref1, rtol=1e-4, atol=1e-4), "mismatch (case 1)"

    # Case 2: ragged multi-tile shapes, f32 compute, small tiles -> exercises
    # S-tile accumulation, L/S zero padding and the Ksum pad-count subtraction.
    L2, S2 = 20, 28
    x2 = jax.random.normal(jax.random.PRNGKey(1), (N, L2, d_model), jnp.float32)
    s2 = jax.random.normal(jax.random.PRNGKey(2), (N, S2, d_model), jnp.float32)
    out2 = jax.block_until_ready(
        loftr_encoder_layer(x2, s2, params, nhead, compute_dtype=jnp.float32,
                            l_tile=8, s_tile=8))
    ref2 = loftr_encoder_layer_ref(x2, s2, params, nhead)
    assert out2.shape == (N, L2, d_model)
    assert jnp.allclose(out2, ref2, rtol=1e-4, atol=1e-4), "mismatch (case 2)"

    # Case 3: default bf16 MXU operands (f32 accumulate / elementwise), loose tol
    out3 = jax.block_until_ready(loftr_encoder_layer(x1, s1, params, nhead))
    assert out3.shape == (N, L1, d_model)
    assert bool(jnp.all(jnp.isfinite(out3)))
    assert jnp.allclose(out3, ref1, rtol=2e-1, atol=2e-1), "mismatch (bf16 case 3)"

    # Case 4: default bf16 with ragged shapes -> exercises 16-row tile alignment
    # and pad handling in bf16 mode.
    out4 = jax.block_until_ready(loftr_encoder_layer(x2, s2, params, nhead))
    assert out4.shape == (N, L2, d_model)
    assert bool(jnp.all(jnp.isfinite(out4)))
    assert jnp.allclose(out4, ref2, rtol=2e-1, atol=2e-1), "mismatch (bf16 case 4)"

    print("KERNEL_OK")
</pallas_src>

<mosaic_0001>
module attributes {stable_mosaic.version = 11 : i64} {
  func.func @_kv_summary_kernel(%arg0: i32, %arg1: i32, %arg2: memref<1x8x32xf32, #tpu.memory_space<vmem>>, %arg3: memref<32x64xf32, #tpu.memory_space<vmem>>, %arg4: memref<1x32x32xf32, #tpu.memory_space<vmem>>, %arg5: memref<1x1x32xf32, #tpu.memory_space<vmem>>, %arg6: memref<32x32xf32, #tpu.memory_space<vmem>>, %arg7: memref<1x32xf32, #tpu.memory_space<vmem>>) attributes {dimension_semantics = [#tpu.dimension_semantics<parallel>, #tpu.dimension_semantics<arbitrary>], iteration_bounds = array<i64: 2, 1>, scalar_prefetch = 0 : i64, scratch_operands = 2 : i64, tpu.core_type = #tpu.core_type<tc>, window_params = [{transform_indices = @transform_0, window_bounds = array<i64: 1, 8, 32>}, {pipeline_mode = #tpu.pipeline_mode<synchronous>, transform_indices = @transform_1, window_bounds = array<i64: 32, 64>}, {transform_indices = @transform_2, window_bounds = array<i64: 1, 32, 32>}, {transform_indices = @transform_3, window_bounds = array<i64: 1, 1, 32>}]} {
    %c0_i32 = arith.constant 0 : i32
    %0 = arith.cmpi eq, %arg1, %c0_i32 : i32
    %1 = arith.extui %0 : i1 to i32
    %c0_i32_0 = arith.constant 0 : i32
    %2 = arith.cmpi ne, %1, %c0_i32_0 : i32
    scf.if %2 {
      %cst_19 = arith.constant 0.000000e+00 : f32
      %27 = vector.broadcast %cst_19 : f32 to vector<32x32xf32>
      %c0_20 = arith.constant 0 : index
      %c0_21 = arith.constant 0 : index
      %28 = vector.load %arg6[%c0_20, %c0_21] : memref<32x32xf32, #tpu.memory_space<vmem>>, vector<32x32xf32>
      tpu.vector_store %arg6[%c0_20, %c0_21], %27 {strides = array<i32>} : memref<32x32xf32, #tpu.memory_space<vmem>>, vector<32x32xf32>,
      %cst_22 = arith.constant 0.000000e+00 : f32
      %29 = vector.broadcast %cst_22 : f32 to vector<1x32xf32>
      %c0_23 = arith.constant 0 : index
      %c0_24 = arith.constant 0 : index
      %30 = vector.load %arg7[%c0_23, %c0_24] : memref<1x32xf32, #tpu.memory_space<vmem>>, vector<1x32xf32>
      tpu.vector_store %arg7[%c0_23, %c0_24], %29 {strides = array<i32>} : memref<1x32xf32, #tpu.memory_space<vmem>>, vector<1x32xf32>,
    } else {
    }
    %c0 = arith.constant 0 : index
    %c0_1 = arith.constant 0 : index
    %c0_2 = arith.constant 0 : index
    %3 = vector.load %arg2[%c0, %c0_1, %c0_2] : memref<1x8x32xf32, #tpu.memory_space<vmem>>, vector<1x8x32xf32>
    %4 = vector.shape_cast %3 : vector<1x8x32xf32> to vector<8x32xf32>
    %c0_3 = arith.constant 0 : index
    %c0_4 = arith.constant 0 : index
    %5 = vector.load %arg3[%c0_3, %c0_4] : memref<32x64xf32, #tpu.memory_space<vmem>>, vector<32x64xf32>
    %cst = arith.constant dense<0.000000e+00> : vector<8x64xf32>
    %6 = tpu.matmul %4, %5, %cst {dimension_numbers = #tpu.dot_dimension_numbers<[1], [0], [0], [1], [0, 0, 1, 1], [], []>} : vector<8x32xf32>, vector<32x64xf32>, vector<8x64xf32> -> vector<8x64xf32>
    %7 = vector.extract_strided_slice %6 {offsets = [0, 0], sizes = [8, 32], strides = [1, 1]} : vector<8x64xf32> to vector<8x32xf32>
    %8 = vector.extract_strided_slice %6 {offsets = [0, 32], sizes = [8, 32], strides = [1, 1]} : vector<8x64xf32> to vector<8x32xf32>
    %cst_5 = arith.constant 0.000000e+00 : f32
    %9 = vector.broadcast %cst_5 : f32 to vector<8x32xf32>
    %10 = arith.cmpf ogt, %7, %9 : vector<8x32xf32>
    %cst_6 = arith.constant 1.000000e+00 : f32
    %11 = vector.broadcast %cst_6 : f32 to vector<8x32xf32>
    %12 = arith.addf %7, %11 : vector<8x32xf32>
    %13 = math.exp %7 : vector<8x32xf32>
    %14 = arith.select %10, %12, %13 : vector<8x32xi1>, vector<8x32xf32>
    %c0_7 = arith.constant 0 : index
    %c0_8 = arith.constant 0 : index
    %15 = vector.load %arg6[%c0_7, %c0_8] : memref<32x32xf32, #tpu.memory_space<vmem>>, vector<32x32xf32>
    %cst_9 = arith.constant dense<0.000000e+00> : vector<32x32xf32>
    %16 = tpu.matmul %14, %8, %cst_9 {dimension_numbers = #tpu.dot_dimension_numbers<[0], [0], [1], [1], [0, 1, 1, 1], [], []>} : vector<8x32xf32>, vector<8x32xf32>, vector<32x32xf32> -> vector<32x32xf32>
    %17 = arith.addf %15, %16 : vector<32x32xf32>
    %c0_10 = arith.constant 0 : index
    %c0_11 = arith.constant 0 : index
    %18 = vector.load %arg6[%c0_10, %c0_11] : memref<32x32xf32, #tpu.memory_space<vmem>>, vector<32x32xf32>
    tpu.vector_store %arg6[%c0_10, %c0_11], %17 {strides = array<i32>} : memref<32x32xf32, #tpu.memory_space<vmem>>, vector<32x32xf32>,
    %c0_12 = arith.constant 0 : index
    %c0_13 = arith.constant 0 : index
    %19 = vector.load %arg7[%c0_12, %c0_13] : memref<1x32xf32, #tpu.memory_space<vmem>>, vector<1x32xf32>
    %cst_14 = arith.constant dense<0.000000e+00> : vector<32xf32>
    %20 = vector.multi_reduction <add>, %14, %cst_14 [0] : vector<8x32xf32> to vector<32xf32>
    %21 = vector.shape_cast %20 : vector<32xf32> to vector<1x32xf32>
    %22 = arith.addf %19, %21 : vector<1x32xf32>
    %c0_15 = arith.constant 0 : index
    %c0_16 = arith.constant 0 : index
    %23 = vector.load %arg7[%c0_15, %c0_16] : memref<1x32xf32, #tpu.memory_space<vmem>>, vector<1x32xf32>
    tpu.vector_store %arg7[%c0_15, %c0_16], %22 {strides = array<i32>} : memref<1x32xf32, #tpu.memory_space<vmem>>, vector<1x32xf32>,
    %c0_i32_17 = arith.constant 0 : i32
    %24 = arith.cmpi eq, %arg1, %c0_i32_17 : i32
    %25 = arith.extui %24 : i1 to i32
    %c0_i32_18 = arith.constant 0 : i32
    %26 = arith.cmpi ne, %25, %c0_i32_18 : i32
    scf.if %26 {
      %c0_19 = arith.constant 0 : index
      %c0_20 = arith.constant 0 : index
      %27 = vector.load %arg6[%c0_19, %c0_20] : memref<32x32xf32, #tpu.memory_space<vmem>>, vector<32x32xf32>
      %c0_21 = arith.constant 0 : index
      %c0_22 = arith.constant 0 : index
      %c0_23 = arith.constant 0 : index
      %28 = vector.load %arg4[%c0_21, %c0_22, %c0_23] : memref<1x32x32xf32, #tpu.memory_space<vmem>>, vector<1x32x32xf32>
      %29 = vector.shape_cast %28 : vector<1x32x32xf32> to vector<32x32xf32>
      %30 = vector.shape_cast %27 : vector<32x32xf32> to vector<1x32x32xf32>
      tpu.vector_store %arg4[%c0_21, %c0_22, %c0_23], %30 {strides = array<i32>} : memref<1x32x32xf32, #tpu.memory_space<vmem>>, vector<1x32x32xf32>,
      %c0_24 = arith.constant 0 : index
      %c0_25 = arith.constant 0 : index
      %31 = vector.load %arg7[%c0_24, %c0_25] : memref<1x32xf32, #tpu.memory_space<vmem>>, vector<1x32xf32>
      %c0_26 = arith.constant 0 : index
      %c0_27 = arith.constant 0 : index
      %c0_28 = arith.constant 0 : index
      %32 = vector.load %arg5[%c0_26, %c0_27, %c0_28] : memref<1x1x32xf32, #tpu.memory_space<vmem>>, vector<1x1x32xf32>
      %33 = vector.shape_cast %32 : vector<1x1x32xf32> to vector<1x32xf32>
      %34 = vector.shape_cast %31 : vector<1x32xf32> to vector<1x1x32xf32>
      tpu.vector_store %arg5[%c0_26, %c0_27, %c0_28], %34 {strides = array<i32>} : memref<1x1x32xf32, #tpu.memory_space<vmem>>, vector<1x1x32xf32>,
    } else {
    }
    return
  }
  func.func @transform_0(%arg0: i32, %arg1: i32) -> (i32, i32, i32) {
    %c0_i32 = arith.constant 0 : i32
    %c0_i32_0 = arith.constant 0 : i32
    return %arg0, %arg1, %c0_i32 : i32, i32, i32
  }
  func.func @transform_1(%arg0: i32, %arg1: i32) -> (i32, i32) {
    %c0_i32 = arith.constant 0 : i32
    %c0_i32_0 = arith.constant 0 : i32
    %c0_i32_1 = arith.constant 0 : i32
    return %c0_i32, %c0_i32_0 : i32, i32
  }
  func.func @transform_2(%arg0: i32, %arg1: i32) -> (i32, i32, i32) {
    %c0_i32 = arith.constant 0 : i32
    %c0_i32_0 = arith.constant 0 : i32
    %c0_i32_1 = arith.constant 0 : i32
    return %arg0, %c0_i32, %c0_i32_0 : i32, i32, i32
  }
  func.func @transform_3(%arg0: i32, %arg1: i32) -> (i32, i32, i32) {
    %c0_i32 = arith.constant 0 : i32
    %c0_i32_0 = arith.constant 0 : i32
    %c0_i32_1 = arith.constant 0 : i32
    return %arg0, %c0_i32, %c0_i32_0 : i32, i32, i32
  }
}

</mosaic_0001>

<llo_original>
// kernel: tpu_custom_call.1
$region0: #{tpu_custom_call.1}
  #allocation0 [shape = 'u32[]', space=smem, size = 0x4, offset = 0x4, fixed_abs, tag = 'smem constant byte address 0x4 - core index']
  #allocation1 [shape = 'u32[72,128]{1,0:T(1,128)}', space=vmem, size = 0x9000, scoped, tag = 'internal scratch']
  #allocation2 [shape = 'f32[32,32]{1,0:T(8,128)}', space=vmem, size = 0x4000, scoped, tag = 'scratch operand']
  #allocation3 [shape = 'f32[1,32]{1,0:T(1,128)}', space=vmem, size = 0x200, scoped, tag = 'scratch operand']
  %s0 = inlined_call_operand.hbm [shape: f32[2,8,32], index: 0, kind: input, shape index: {}]
  %s1 = inlined_call_operand.hbm [shape: f32[32,64], index: 1, kind: input, shape index: {}]
  %s2 = inlined_call_operand.hbm [shape: f32[2,32,32], index: 2, kind: output, shape index: {0}]
  %s3 = inlined_call_operand.hbm [shape: f32[2,1,32], index: 3, kind: output, shape index: {1}]
  %4 = xla_tuple %s2, %s3
  %s5 = sld [smem:[#allocation0]]
  $region65: #{tpu_custom_call.1} parent=0
    _
  %s7 = ssub.s32 1, %s5
  %s8 = scalar_select 0, %s7, %s5
  $region1: #{tpu_custom_call.1} parent=0
    #allocation4 [shape = 'u8[8192]{0}', space=vmem, size = 0x2000, scoped, tag = 'input window, operand 0']
    #allocation5 [shape = 's32[2]{0}', space=sflag, size = 0x8, scoped, tag = 'scoped memory for tpu_custom_call.1']
    #allocation6 [shape = 's32[2]{0}', space=sflag, size = 0x8, scoped, tag = 'scoped memory for tpu_custom_call.1']
    #allocation7 [shape = 'u8[16384]{0}', space=vmem, size = 0x4000, scoped, tag = 'input window, operand 1, single buffered']
    #allocation8 [shape = 's32[1]{0}', space=sflag, size = 0x4, scoped, tag = 'scoped memory for tpu_custom_call.1']
    #allocation9 [shape = 'u8[32768]{0}', space=vmem, size = 0x8000, scoped, tag = 'output window, operand 0']
    #allocation10 [shape = 'u8[1024]{0}', space=vmem, size = 0x400, scoped, tag = 'output window, operand 1']
    #allocation11 [shape = 's32[2]{0}', space=sflag, size = 0x8, scoped, tag = 'scoped memory for tpu_custom_call.1']
    %9 = vsyncpa [#allocation5], 0
    %s10 = scalar_lea.sflag [#allocation5], 1
    %11 = vsyncpa %s10, 0
    %12 = vsyncpa [#allocation8], 0
    %13 = vsyncpa [#allocation6], 0
    %s14 = scalar_lea.sflag [#allocation6], 1
    %15 = vsyncpa %s14, 0
    %16 = vsyncpa [#allocation11], 0
    %s17 = scalar_lea.sflag [#allocation11], 1
    %18 = vsyncpa %s17, 0
    loop: start=0, step=1, limit=4
    $region2: #{tpu_custom_call.1} parent=1 // loop_pre_header
      _
    $region3: #{tpu_custom_call.1} parent=1 // loop_header
      %s20 = sphi 0, %s24
      %p21 = scmp.ge.s32.totalorder %s20, 4
      %s27 = sphi 0, %s39
      %s28 = sphi 0, %s35
      %s29 = sphi 0, %s27
      %s30 = sphi 0, %s28
      %s31 = sphi 0, %s29
      %s32 = sphi 0, %s30
      %s44 = sphi 0, %s46
      %s47 = sphi 0, %s44
      %s48 = sphi 0, %s47
      %s64 = sphi 0, %s48
      %s68 = sphi 0, %s68
      %s70 = sphi 0, %s68
      %s71 = sphi 0, %s70
      %s85 = sphi 0, %s71
      %s91 = sphi 0, %s93
      %s94 = sphi 0, %s91
      %s95 = sphi 0, %s94
      %s111 = sphi 0, %s95
      %s117 = sphi 0, %s119
      %s120 = sphi 0, %s117
      %s121 = sphi 0, %s120
      %s137 = sphi 0, %s121
    $region4: #{tpu_custom_call.1} parent=1 // loop_header_branch
      %23 = sbr.rel (%p21) target = $region8
    $region5: #{tpu_custom_call.1} parent=1 // loop_body
      %s25 = ssub.s32 %s20, 1
      %s26 = ssub.s32 %s20, 2
      %s33 = sadd.s32 1, %s28
      %p34 = scmp.ge.s32.totalorder %s33, 1
      %s35 = scalar_select %p34, 0, %s33
      %s36 = sadd.s32 1, %s27
      %s37 = scalar_select %p34, %s36, %s27
      %p38 = scmp.ge.s32.totalorder %s37, 2
      %s39 = scalar_select %p38, 0, %s37
      %s40 = ssub.s32 %s27, %s39
      %s41 = ssub.s32 %s28, %s35
      %s42 = sor.u32 %s40, %s41
      %p43 = scmp.eq.s32.totalorder %s42, 0
      %s45 = sadd.s32 %s44, 1
      %s46 = scalar_select %p43, %s44, %s45
      %p49 = pneg %p43
      %p50 = scmp.eq.s32.totalorder %s20, 1
      %p51 = por %p49, %p50
      %p52 = scmp.ne.s32.totalorder %s44, %s47
      %p53 = scmp.eq.s32.totalorder %s20, 0
      %p54 = por %p52, %p53
      %p55 = scmp.ne.s32.totalorder %s44, %s47
      %p56 = scmp.eq.s32.totalorder %s25, 1
      %p57 = por %p55, %p56
      %p58 = scmp.ne.s32.totalorder %s47, %s48
      %p59 = scmp.eq.s32.totalorder %s25, 0
      %p60 = por %p58, %p59
      %p61 = scmp.ne.s32.totalorder %s47, %s48
      %p62 = scmp.eq.s32.totalorder %s26, 1
      %p63 = por %p61, %p62
      %p65 = scmp.ne.s32.totalorder %s48, %s64
      %p66 = scmp.eq.s32.totalorder %s26, 0
      %p67 = por %p65, %p66
      %s69 = sadd.s32 %s68, 1
      %p72 = scmp.eq.s32.totalorder %s20, 1
      %p73 = scmp.ne.s32.totalorder %s68, %s70
      %p74 = scmp.eq.s32.totalorder %s20, 0
      %p75 = por %p73, %p74
      %p76 = scmp.ne.s32.totalorder %s68, %s70
      %p77 = scmp.eq.s32.totalorder %s25, 1
      %p78 = por %p76, %p77
      %p79 = scmp.ne.s32.totalorder %s70, %s71
      %p80 = scmp.eq.s32.totalorder %s25, 0
      %p81 = por %p79, %p80
      %p82 = scmp.ne.s32.totalorder %s70, %s71
      %p83 = scmp.eq.s32.totalorder %s26, 1
      %p84 = por %p82, %p83
      %p86 = scmp.ne.s32.totalorder %s71, %s85
      %p87 = scmp.eq.s32.totalorder %s26, 0
      %p88 = por %p86, %p87
      %s89 = ssub.s32 %s27, %s39
      %p90 = scmp.eq.s32.totalorder %s89, 0
      %s92 = sadd.s32 %s91, 1
      %s93 = scalar_select %p90, %s91, %s92
      %p96 = pneg %p90
      %p97 = scmp.eq.s32.totalorder %s20, 1
      %p98 = por %p96, %p97
      %p99 = scmp.ne.s32.totalorder %s91, %s94
      %p100 = scmp.eq.s32.totalorder %s20, 0
      %p101 = por %p99, %p100
      %p102 = scmp.ne.s32.totalorder %s91, %s94
      %p103 = scmp.eq.s32.totalorder %s25, 1
      %p104 = por %p102, %p103
      %p105 = scmp.ne.s32.totalorder %s94, %s95
      %p106 = scmp.eq.s32.totalorder %s25, 0
      %p107 = por %p105, %p106
      %p108 = scmp.ne.s32.totalorder %s94, %s95
      %p109 = scmp.eq.s32.totalorder %s26, 1
      %p110 = por %p108, %p109
      %p112 = scmp.ne.s32.totalorder %s95, %s111
      %p113 = scmp.eq.s32.totalorder %s26, 0
      %p114 = por %p112, %p113
      %s115 = ssub.s32 %s27, %s39
      %p116 = scmp.eq.s32.totalorder %s115, 0
      %s118 = sadd.s32 %s117, 1
      %s119 = scalar_select %p116, %s117, %s118
      %p122 = pneg %p116
      %p123 = scmp.eq.s32.totalorder %s20, 1
      %p124 = por %p122, %p123
      %p125 = scmp.ne.s32.totalorder %s117, %s120
      %p126 = scmp.eq.s32.totalorder %s20, 0
      %p127 = por %p125, %p126
      %p128 = scmp.ne.s32.totalorder %s117, %s120
      %p129 = scmp.eq.s32.totalorder %s25, 1
      %p130 = por %p128, %p129
      %p131 = scmp.ne.s32.totalorder %s120, %s121
      %p132 = scmp.eq.s32.totalorder %s25, 0
      %p133 = por %p131, %p132
      %p134 = scmp.ne.s32.totalorder %s120, %s121
      %p135 = scmp.eq.s32.totalorder %s26, 1
      %p136 = por %p134, %p135
      %p138 = scmp.ne.s32.totalorder %s121, %s137
      %p139 = scmp.eq.s32.totalorder %s26, 0
      %p140 = por %p138, %p139
      %p141 = scmp.le.s32.totalorder 1, %s20
      %p142 = scmp.lt.s32.totalorder %s20, 3
      %p143 = pnand %p141, %p142
      %p144 = pneg %p143
      // Predicated region
      $region9: #{tpu_custom_call.1} parent=5 // pred_check
        _
      $region10: #{tpu_custom_call.1} parent=5 // pred_check_branch
        %146 = sbr.rel (%p143) target = $region12
      $region11: #{tpu_custom_call.1} parent=5 // pred_region
        %s147 = ssub.s32 %s20, 1
        // Predicated region
        $region13: #{tpu_custom_call.1} parent=11 // pred_check
          %p148 = pneg %p81
        $region14: #{tpu_custom_call.1} parent=11 // pred_check_branch
          %150 = sbr.rel (%p148) target = $region16
        $region15: #{tpu_custom_call.1} parent=11 // pred_region
          %152 = vsyncadd [#allocation8], 0
          %s153 = sshll.u32 %s1, 4
          %s154 = int_to_ptr.hbm [resolvable:$true] %s153
          %s155 = sshll.u32 [#allocation7], 4
          %s156 = int_to_ptr.vmem [resolvable:$true] %s155
          %161 = dma.hbm_to_vmem [thread:$0]  %s154, 512, %s156, [#allocation8], 128, 128, 8
        $region16: #{tpu_custom_call.1} parent=11 // pred_fallthru
          _
      $region12: #{tpu_custom_call.1} parent=5 // pred_fallthru
        _
      %p162 = scmp.lt.s32.totalorder %s20, 2
      // Predicated region
      $region17: #{tpu_custom_call.1} parent=5 // pred_check
        %p163 = pneg %p162
      $region18: #{tpu_custom_call.1} parent=5 // pred_check_branch
        %165 = sbr.rel (%p163) target = $region20
      $region19: #{tpu_custom_call.1} parent=5 // pred_region
        // Predicated region
        $region21: #{tpu_custom_call.1} parent=19 // pred_check
          %p166 = pneg %p54
        $region22: #{tpu_custom_call.1} parent=19 // pred_check_branch
          %168 = sbr.rel (%p166) target = $region24
        $region23: #{tpu_custom_call.1} parent=19 // pred_region
          %s169 = sand.u32 %s44, 1
          %s170 = scalar_lea.sflag [#allocation5], %s169
          %s171 = sand.u32 %s44, 1
          %s172 = smul.addr %s171, 8
          %s173 = scalar_lea.vmem [#allocation4], %s172
          %175 = vsyncadd %s170, 0
          %s176 = sadd.s32 %s28, %s27
          %s177 = smul.addr %s176, 8
          %s178 = scalar_lea.hbm %s0, %s177
          %s180 = sshll.u32 %s178, 4
          %s181 = int_to_ptr.hbm [resolvable:$true] %s180
          %s182 = sshll.u32 %s173, 4
          %s183 = int_to_ptr.vmem [resolvable:$true] %s182
          %185 = dma.hbm_to_vmem [thread:$0]  %s181, 128, %s183, %s170
        $region24: #{tpu_custom_call.1} parent=19 // pred_fallthru
          _
      $region20: #{tpu_custom_call.1} parent=5 // pred_fallthru
        _
      %p186 = scmp.le.s32.totalorder 1, %s20
      %p187 = scmp.lt.s32.totalorder %s20, 3
      %p188 = pnand %p186, %p187
      %p189 = pneg %p188
      // Predicated region
      $region25: #{tpu_custom_call.1} parent=5 // pred_check
        _
      $region26: #{tpu_custom_call.1} parent=5 // pred_check_branch
        %191 = sbr.rel (%p188) target = $region28
      $region27: #{tpu_custom_call.1} parent=5 // pred_region
        %s192 = ssub.s32 %s20, 1
        %s193 = sand.u32 %s47, 1
        %s194 = scalar_lea.sflag [#allocation5], %s193
        %s195 = sand.u32 %s47, 1
        %s196 = smul.addr %s195, 8
        %s197 = scalar_lea.vmem [#allocation4], %s196
        // Predicated region
        $region29: #{tpu_custom_call.1} parent=27 // pred_check
          %p198 = pneg %p60
        $region30: #{tpu_custom_call.1} parent=27 // pred_check_branch
          %200 = sbr.rel (%p198) target = $region32
        $region31: #{tpu_custom_call.1} parent=27 // pred_region
          %202 = dma.done %s194, 128
        $region32: #{tpu_custom_call.1} parent=27 // pred_fallthru
          _
        // Predicated region
        $region33: #{tpu_custom_call.1} parent=27 // pred_check
          %p203 = pneg %p81
        $region34: #{tpu_custom_call.1} parent=27 // pred_check_branch
          %205 = sbr.rel (%p203) target = $region36
        $region35: #{tpu_custom_call.1} parent=27 // pred_region
          %207 = dma.done [#allocation8], 512
        $region36: #{tpu_custom_call.1} parent=27 // pred_fallthru
          _
        %s208 = sand.u32 %s47, 1
        %s209 = scalar_lea.sflag [#allocation5], %s208
        %s210 = sand.u32 %s47, 1
        %s211 = smul.addr %s210, 8
        %s212 = scalar_lea.vmem [#allocation4], %s211
        %p213 = pneg %p60
        %p214 = pneg %p57
        %p215 = pneg %p81
        %p216 = pneg %p78
        %p217 = pneg %p107
        %p218 = pneg %p104
        %s219 = sand.u32 %s94, 1
        %s220 = scalar_lea.sflag [#allocation6], %s219
        %s221 = sand.u32 %s94, 1
        %s222 = smul.addr %s221, 32
        %s223 = scalar_lea.vmem [#allocation9], %s222
        %p224 = pneg %p133
        %p225 = pneg %p130
        %s226 = sand.u32 %s120, 1
        %s227 = scalar_lea.sflag [#allocation11], %s226
        %s228 = sand.u32 %s120, 1
        %s229 = scalar_lea.vmem [#allocation10], %s228
        %p230 = scmp.eq.s32.totalorder %s30, 0
        // Predicated region
        $region37: #{tpu_custom_call.1} parent=27 // pred_check
          %p231 = pneg %p230
        $region38: #{tpu_custom_call.1} parent=27 // pred_check_branch
          %233 = sbr.rel (%p231) target = $region40
        $region39: #{tpu_custom_call.1} parent=27 // pred_region
          %vm234 = vcmask 261120
          %235 = vst.msk [vmem:[#allocation2] sm:$0xff] %vm234, 0.0
          %236 = vst.msk [vmem:[#allocation2 + $0x8] sm:$0xff] %vm234, 0.0
          %237 = vst.msk [vmem:[#allocation2 + $0x10] sm:$0xff] %vm234, 0.0
          %238 = vst.msk [vmem:[#allocation2 + $0x18] sm:$0xff] %vm234, 0.0
          %vm239 = vcmask 253952
          %240 = vst.msk [vmem:[#allocation3] sm:$0x1] %vm239, 0.0
        $region40: #{tpu_custom_call.1} parent=27 // pred_fallthru
          _
        %v241 = vld [vmem:[%s197] sm:$0xff]
        %v242 = vld [vmem:[#allocation7] sm:$0xff]
        %v243 = vld [vmem:[#allocation7 + $0x8] sm:$0xff]
        %v244 = vld [vmem:[#allocation7 + $0x10] sm:$0xff]
        %v245 = vld [vmem:[#allocation7 + $0x18] sm:$0xff]
        %vm246 = vcmask 261120
        %v248 = vsel %vm246, %v241, 0
        %250 = vmatpush.msra.mxu0 0.0
        %251 = vmatpush.msra.mxu0 0.0
        %252 = vmatpush.msra.mxu0 0.0
        %253 = vmatpush.msra.mxu0 0.0
        %254 = vmatpush.msra.mxu0 0.0
        %255 = vmatpush.msra.mxu0 0.0
        %256 = vmatpush.msra.mxu0 0.0
        %257 = vmatpush.msra.mxu0 0.0
        %258 = vmatpush.msra.mxu0 0.0
        %259 = vmatpush.msra.mxu0 0.0
        %260 = vmatpush.msra.mxu0 0.0
        %261 = vmatpush.msra.mxu0 0.0
        %262 = vmatpush.msra.mxu0 %v245
        %263 = vmatpush.msra.mxu0 %v244
        %264 = vmatpush.msra.mxu0 %v243
        %265 = vmatpush.msra.mxu0 %v242
        %266 = vmatmul.f32.gmra.mxu0 %v248
        %v267 = vpop.f32.mrf.mxu0
        %v268 = vadd.f32 0.0, %v267
        %269 = vdwg.mxu0
        %vm270 = vcmp.gt.f32.partialorder %v268, 0.0
        %v271 = vadd.f32 %v268, 1.0
        %v272 = vmul.f32 %v268, 1.442695
        %v273 = vpow.pop %v272
        %v274 = vsel %vm270, %v271, %v273
        %v275 = vld [vmem:[#allocation2] sm:$0xff]
        %v276 = vld [vmem:[#allocation2 + $0x8] sm:$0xff]
        %v277 = vld [vmem:[#allocation2 + $0x10] sm:$0xff]
        %v278 = vld [vmem:[#allocation2 + $0x18] sm:$0xff]
        %279 = vxpose.xlu0.b32.start [1/16] %v274, 128
        %280 = vxpose.xlu0.b32.cont [2/16] 0.0, 128
        %281 = vxpose.xlu0.b32.cont [3/16] 0.0, 128
        %282 = vxpose.xlu0.b32.cont [4/16] 0.0, 128
        %283 = vxpose.xlu0.b32.cont [5/16] 0.0, 128
        %284 = vxpose.xlu0.b32.cont [6/16] 0.0, 128
        %285 = vxpose.xlu0.b32.cont [7/16] 0.0, 128
        %286 = vxpose.xlu0.b32.cont [8/16] 0.0, 128
        %287 = vxpose.xlu0.b32.cont [9/16] 0.0, 128
        %288 = vxpose.xlu0.b32.cont [10/16] 0.0, 128
        %289 = vxpose.xlu0.b32.cont [11/16] 0.0, 128
        %290 = vxpose.xlu0.b32.cont [12/16] 0.0, 128
        %291 = vxpose.xlu0.b32.cont [13/16] 0.0, 128
        %292 = vxpose.xlu0.b32.cont [14/16] 0.0, 128
        %293 = vxpose.xlu0.b32.cont [15/16] 0.0, 128
        %294 = vxpose.xlu0.b32.end [16/16] 0.0, 128
        %v295 = vpop.trf.xlu0
        %v296 = vpop.trf.xlu0
        %v297 = vpop.trf.xlu0
        %v298 = vpop.trf.xlu0
        %v299 = vpop.trf.xlu0
        %v300 = vpop.trf.xlu0
        %v301 = vpop.trf.xlu0
        %v302 = vpop.trf.xlu0
        %v303 = vpop.trf.xlu0
        %v304 = vpop.trf.xlu0
        %v305 = vpop.trf.xlu0
        %v306 = vpop.trf.xlu0
        %v307 = vpop.trf.xlu0
        %v308 = vpop.trf.xlu0
        %v309 = vpop.trf.xlu0
        %v310 = vpop.trf.xlu0
        %312 = vrot.lane.b32.xlu0 %v268, 96
        %v313 = vpop.permute.xlu0 %312
        %vm315 = vcmask 64512
        %v317 = vsel %vm315, %v295, 0
        %v320 = vsel %vm315, %v296, 0
        %v323 = vsel %vm315, %v297, 0
        %v326 = vsel %vm315, %v298, 0
        %328 = vmatpush.msra.mxu0 0.0
        %329 = vmatpush.msra.mxu0 0.0
        %330 = vmatpush.msra.mxu0 0.0
        %331 = vmatpush.msra.mxu0 0.0
        %332 = vmatpush.msra.mxu0 0.0
        %333 = vmatpush.msra.mxu0 0.0
        %334 = vmatpush.msra.mxu0 0.0
        %335 = vmatpush.msra.mxu0 0.0
        %336 = vmatpush.msra.mxu0 0.0
        %337 = vmatpush.msra.mxu0 0.0
        %338 = vmatpush.msra.mxu0 0.0
        %339 = vmatpush.msra.mxu0 0.0
        %340 = vmatpush.msra.mxu0 0.0
        %341 = vmatpush.msra.mxu0 0.0
        %342 = vmatpush.msra.mxu0 0.0
        %343 = vmatpush.msra.mxu0 %v313
        %344 = vmatmul.f32.gmra.mxu0 %v317
        %v345 = vpop.f32.mrf.mxu0
        %v346 = vadd.f32 0.0, %v345
        %347 = vmatmul.f32.gmra.mxu0 %v320
        %v348 = vpop.f32.mrf.mxu0
        %v349 = vadd.f32 0.0, %v348
        %350 = vmatmul.f32.gmra.mxu0 %v323
        %v351 = vpop.f32.mrf.mxu0
        %v352 = vadd.f32 0.0, %v351
        %353 = vmatmul.f32.gmra.mxu0 %v326
        %v354 = vpop.f32.mrf.mxu0
        %v355 = vadd.f32 0.0, %v354
        %356 = vdwg.mxu0
        %v357 = vadd.f32 %v275, %v346
        %v358 = vadd.f32 %v276, %v349
        %v359 = vadd.f32 %v277, %v352
        %v360 = vadd.f32 %v278, %v355
        %361 = vst.msk [vmem:[#allocation2] sm:$0xff] %vm246, %v357
        %362 = vst.msk [vmem:[#allocation2 + $0x8] sm:$0xff] %vm246, %v358
        %363 = vst.msk [vmem:[#allocation2 + $0x10] sm:$0xff] %vm246, %v359
        %364 = vst.msk [vmem:[#allocation2 + $0x18] sm:$0xff] %vm246, %v360
        %v365 = vld [vmem:[#allocation3] sm:$0x1]
        %v366 = vsel %vm246, %v274, 0.0
        %v367 = vrot.slane %v366, 4
        %v368 = vadd.f32 %v366, %v367
        %v369 = vrot.slane %v368, 2
        %v370 = vadd.f32 %v368, %v369
        %v371 = vrot.slane %v370, 1
        %v372 = vadd.f32 %v370, %v371
        %v373 = vadd.f32 %v365, %v372
        %vm374 = vcmask 253952
        %375 = vst.msk [vmem:[#allocation3] sm:$0x1] %vm374, %v373
        // Predicated region
        $region41: #{tpu_custom_call.1} parent=27 // pred_check
          %p376 = pneg %p230
        $region42: #{tpu_custom_call.1} parent=27 // pred_check_branch
          %378 = sbr.rel (%p376) target = $region44
        $region43: #{tpu_custom_call.1} parent=27 // pred_region
          %v379 = vld [vmem:[#allocation2] sm:$0xff]
          %v380 = vld [vmem:[#allocation2 + $0x8] sm:$0xff]
          %v381 = vld [vmem:[#allocation2 + $0x10] sm:$0xff]
          %v382 = vld [vmem:[#allocation2 + $0x18] sm:$0xff]
          %383 = vst.msk [vmem:[%s223] sm:$0xff] %vm246, %v379
          %384 = vst.msk [vmem:[%s223 + $0x8] sm:$0xff] %vm246, %v380
          %385 = vst.msk [vmem:[%s223 + $0x10] sm:$0xff] %vm246, %v381
          %386 = vst.msk [vmem:[%s223 + $0x18] sm:$0xff] %vm246, %v382
          %v387 = vld [vmem:[#allocation3] sm:$0x1]
          %388 = vst.msk [vmem:[%s229] sm:$0x1] %vm374, %v387
        $region44: #{tpu_custom_call.1} parent=27 // pred_fallthru
          _
        %s389 = sand.u32 %s94, 1
        %s390 = scalar_lea.sflag [#allocation6], %s389
        %s391 = sand.u32 %s94, 1
        %s392 = smul.addr %s391, 32
        %s393 = scalar_lea.vmem [#allocation9], %s392
        %s394 = sand.u32 %s120, 1
        %s395 = scalar_lea.sflag [#allocation11], %s394
        %s396 = sand.u32 %s120, 1
        %s397 = scalar_lea.vmem [#allocation10], %s396
        // Predicated region
        $region45: #{tpu_custom_call.1} parent=27 // pred_check
          %p398 = pneg %p104
        $region46: #{tpu_custom_call.1} parent=27 // pred_check_branch
          %400 = sbr.rel (%p398) target = $region48
        $region47: #{tpu_custom_call.1} parent=27 // pred_region
          %402 = vsyncadd %s390, 0
          %s403 = smul.addr %s29, 4
          %s404 = smul.addr %s403, 8
          %s405 = scalar_lea.hbm %s2, %s404
          %s406 = sshll.u32 %s393, 4
          %s407 = int_to_ptr.vmem [resolvable:$true] %s406
          %s408 = sshll.u32 %s405, 4
          %s409 = int_to_ptr.hbm [resolvable:$true] %s408
          %414 = dma.vmem_to_hbm [thread:$0]  %s407, 512, %s409, %s390, 128, 128, 8
        $region48: #{tpu_custom_call.1} parent=27 // pred_fallthru
          _
        // Predicated region
        $region49: #{tpu_custom_call.1} parent=27 // pred_check
          %p415 = pneg %p130
        $region50: #{tpu_custom_call.1} parent=27 // pred_check_branch
          %417 = sbr.rel (%p415) target = $region52
        $region51: #{tpu_custom_call.1} parent=27 // pred_region
          %419 = vsyncadd %s395, 0
          %s420 = scalar_lea.hbm %s3, %s29
          %s422 = sshll.u32 %s397, 4
          %s423 = int_to_ptr.vmem [resolvable:$true] %s422
          %s424 = sshll.u32 %s420, 4
          %s425 = int_to_ptr.hbm [resolvable:$true] %s424
          %427 = dma.vmem_to_hbm [thread:$0]  %s423, 16, %s425, %s395
        $region52: #{tpu_custom_call.1} parent=27 // pred_fallthru
          _
      $region28: #{tpu_custom_call.1} parent=5 // pred_fallthru
        _
      %p428 = scmp.le.s32.totalorder 2, %s20
      // Predicated region
      $region53: #{tpu_custom_call.1} parent=5 // pred_check
        %p429 = pneg %p428
      $region54: #{tpu_custom_call.1} parent=5 // pred_check_branch
        %431 = sbr.rel (%p429) target = $region56
      $region55: #{tpu_custom_call.1} parent=5 // pred_region
        %s432 = ssub.s32 %s20, 2
        // Predicated region
        $region57: #{tpu_custom_call.1} parent=55 // pred_check
          %p433 = pneg %p110
        $region58: #{tpu_custom_call.1} parent=55 // pred_check_branch
          %435 = sbr.rel (%p433) target = $region60
        $region59: #{tpu_custom_call.1} parent=55 // pred_region
          %s436 = sand.u32 %s95, 1
          %s437 = scalar_lea.sflag [#allocation6], %s436
          %s438 = sand.u32 %s95, 1
          %s439 = smul.addr %s438, 32
          %s440 = scalar_lea.vmem [#allocation9], %s439
          %442 = dma.done %s437, 512
        $region60: #{tpu_custom_call.1} parent=55 // pred_fallthru
          _
        // Predicated region
        $region61: #{tpu_custom_call.1} parent=55 // pred_check
          %p443 = pneg %p136
        $region62: #{tpu_custom_call.1} parent=55 // pred_check_branch
          %445 = sbr.rel (%p443) target = $region64
        $region63: #{tpu_custom_call.1} parent=55 // pred_region
          %s446 = sand.u32 %s121, 1
          %s447 = scalar_lea.sflag [#allocation11], %s446
          %s448 = sand.u32 %s121, 1
          %s449 = scalar_lea.vmem [#allocation10], %s448
          %451 = dma.done %s447, 16
        $region64: #{tpu_custom_call.1} parent=55 // pred_fallthru
          _
      $region56: #{tpu_custom_call.1} parent=5 // pred_fallthru
        _
    $region6: #{tpu_custom_call.1} parent=1 // loop_footer
      %s24 = sadd.s32 1, %s20
    $region7: #{tpu_custom_call.1} parent=1 // loop_footer_branch
      %19 = sbr.rel target = $region3
    $region8: #{tpu_custom_call.1} parent=1 // loop_exit
      _
    %452 = vsyncpa [#allocation5], 1
    %s453 = scalar_lea.sflag [#allocation5], 1
    %454 = vsyncpa %s453, 1
    %455 = vsyncpa [#allocation8], 1
    %456 = vsyncpa [#allocation6], 1
    %s457 = scalar_lea.sflag [#allocation6], 1
    %458 = vsyncpa %s457, 1
    %459 = vsyncpa [#allocation11], 1
    %s460 = scalar_lea.sflag [#allocation11], 1
    %461 = vsyncpa %s460, 1

</llo_original>
